<compile_context>
chip_gen: v6e
topology: v6e:2x2x1
jax: 0.10.0
libtpu: 0.0.40
codegen_flags: <defaults>
</compile_context>

<pallas_src>
import jax
import jax.numpy as jnp
from jax.experimental import pallas as pl
from jax.experimental.pallas import tpu as pltpu


def _round_up(x, m):
    return ((x + m - 1) // m) * m


def _smear_kernel(feats_ref, idx_ref, out_ref):
    # feats_ref: (1, C, N_pad)   idx_ref: (1, 1, TP) int32   out_ref: (1, C, TP)
    feats = feats_ref[0]                       # (C, N_pad)
    idx = idx_ref[0]                           # (1, TP)
    n_pad = feats.shape[1]
    tp = idx.shape[1]
    # One-hot selection matrix (N_pad, TP), built directly in the matmul dtype.
    # TODO(synk): try an int16 iota/compare on v6e/v7x (packed VPU lanes) once
    # the Mosaic lowering is verified (bundle dump) to actually pack it.
    iota_n = jax.lax.broadcasted_iota(jnp.int32, (n_pad, tp), 0)
    onehot = (iota_n == idx).astype(feats.dtype)                     # (N_pad, TP)
    gathered = jnp.dot(feats, onehot,
                       preferred_element_type=jnp.float32)           # (C, TP) on MXU
    out_ref[0] = gathered.astype(out_ref.dtype)


def _vmem_budget_bytes():
    # ~70% of physical VMEM per core when queryable; otherwise assume the
    # tightest generation (v7x: 64 MiB/TC) and leave compiler headroom.
    try:
        cap = int(pltpu.get_tpu_info().vmem_capacity_bytes)
        return int(cap * 0.70)
    except Exception:
        return 48 << 20


def _choose_tile_p(P, N_pad, C, itemsize, budget):
    """Pick (TP, P_pad): biggest pixel tile fitting the VMEM budget, preferring
    TP that divides P exactly (no idx pad, no post-kernel slice)."""
    # Per-pixel VMEM bytes: double-buffered idx + out streams, plus the
    # in-kernel (N_pad, TP) iota / mask / one-hot intermediates and f32 result.
    per_px = (2 * 4 + 2 * C * itemsize
              + N_pad * (4 + 4 + itemsize) + 4 * C)
    fixed = 2 * C * N_pad * itemsize + (6 << 20)   # resident feats bufs + headroom
    tp_budget = max(128, (budget - fixed) // per_px)
    # Keep the one-hot intermediate itself in the few-MiB sweet spot.
    tp_onehot = max(128, (8 << 20) // (N_pad * (4 + itemsize)))
    tp_cap = int(min(tp_budget, tp_onehot, 1 << 14))

    if P <= tp_cap:
        return P, P                                # one tile per batch, no padding
    if P % 128 == 0:
        blocks = P // 128
        for d in range(min(tp_cap // 128, blocks), 0, -1):
            if blocks % d == 0:
                return 128 * d, P                  # exact divisor, no pad / slice
    # Fallback: pad the pixel axis (rare); padded pixels sliced off afterwards.
    tp = max(128, (min(tp_cap, _round_up(P, 128)) // 128) * 128)
    return tp, _round_up(P, tp)


def smear(spixel_feats, index_map, n_spixels):
    """spixel_feats: (B, C, N) float; index_map: (B, 1, H, W) int -> (B, C, H, W)."""
    B, C, N = spixel_feats.shape
    assert N == n_spixels
    _, _, H, W = index_map.shape
    P = H * W
    itemsize = jnp.dtype(spixel_feats.dtype).itemsize

    # Pad N only to the sublane granule of the feats/one-hot dtype (8 f32,
    # 16 bf16, 32 int8/fp8).  The feats block spans the full (C, N_pad) dims so
    # no 128-lane padding is required, and VPU mask work stays ~N, not 128.
    granule = max(8, 32 // itemsize)
    N_pad = _round_up(N, granule)
    feats_p = spixel_feats
    if N_pad != N:
        feats_p = jnp.pad(feats_p, ((0, 0), (0, 0), (0, N_pad - N)))

    budget = _vmem_budget_bytes()
    TP, P_pad = _choose_tile_p(P, N_pad, C, itemsize, budget)

    idx_flat = index_map.reshape(B, 1, P).astype(jnp.int32)
    if P_pad != P:
        # Out-of-range index -> matches no one-hot row -> zeros (sliced away).
        idx_flat = jnp.pad(idx_flat, ((0, 0), (0, 0), (0, P_pad - P)),
                           constant_values=N_pad)

    grid = (B, P_pad // TP)

    out = pl.pallas_call(
        _smear_kernel,
        out_shape=jax.ShapeDtypeStruct((B, C, P_pad), spixel_feats.dtype),
        grid_spec=pltpu.PrefetchScalarGridSpec(
            num_scalar_prefetch=0,
            grid=grid,
            in_specs=[
                # feats block index constant across p -> stays resident in VMEM
                # (no per-step re-DMA).
                pl.BlockSpec((1, C, N_pad), lambda b, p: (b, 0, 0)),
                pl.BlockSpec((1, 1, TP), lambda b, p: (b, 0, p)),
            ],
            out_specs=pl.BlockSpec((1, C, TP), lambda b, p: (b, 0, p)),
        ),
        compiler_params=pltpu.CompilerParams(
            dimension_semantics=("parallel", "parallel"),
            vmem_limit_bytes=int(budget),
        ),
    )(feats_p, idx_flat)

    if P_pad != P:
        out = out[:, :, :P]
    return out.reshape(B, C, H, W)


if __name__ == "__main__":
    key = jax.random.PRNGKey(0)
    k1, k2 = jax.random.split(key)

    B, C, H, W = 2, 4, 16, 16
    n_spixels = 16

    spixel_feats = jax.random.normal(k1, (B, C, n_spixels), dtype=jnp.float32)
    index_map = jax.random.randint(k2, (B, 1, H, W), 0, n_spixels, dtype=jnp.int32)

    out = smear(spixel_feats, index_map, n_spixels)
    out = jax.block_until_ready(out)

    # Reference: plain JAX gather along the superpixel axis.
    idx = index_map.reshape(B, 1, H * W)                     # (B, 1, P)
    ref = jnp.take_along_axis(
        spixel_feats,                                        # (B, C, N)
        jnp.broadcast_to(idx, (B, C, H * W)),                # (B, C, P)
        axis=2,
    ).reshape(B, C, H, W)

    assert out.shape == (B, C, H, W)
    assert jnp.allclose(out, ref, atol=1e-5), "mismatch vs reference gather"
    print("KERNEL_OK")
</pallas_src>

<mosaic_0001>
module attributes {stable_mosaic.version = 11 : i64} {
  func.func @_smear_kernel(%arg0: i32, %arg1: i32, %arg2: memref<1x4x16xf32, #tpu.memory_space<vmem>>, %arg3: memref<1x1x256xi32, #tpu.memory_space<vmem>>, %arg4: memref<1x4x256xf32, #tpu.memory_space<vmem>>) attributes {dimension_semantics = [#tpu.dimension_semantics<parallel>, #tpu.dimension_semantics<parallel>], iteration_bounds = array<i64: 2, 1>, scalar_prefetch = 0 : i64, scratch_operands = 0 : i64, tpu.core_type = #tpu.core_type<tc>, window_params = [{transform_indices = @transform_0, window_bounds = array<i64: 1, 4, 16>}, {transform_indices = @transform_1, window_bounds = array<i64: 1, 1, 256>}, {transform_indices = @transform_2, window_bounds = array<i64: 1, 4, 256>}]} {
    %c0 = arith.constant 0 : index
    %c0_0 = arith.constant 0 : index
    %c0_1 = arith.constant 0 : index
    %0 = vector.load %arg2[%c0, %c0_0, %c0_1] : memref<1x4x16xf32, #tpu.memory_space<vmem>>, vector<1x4x16xf32>
    %1 = vector.shape_cast %0 : vector<1x4x16xf32> to vector<4x16xf32>
    %c0_2 = arith.constant 0 : index
    %c0_3 = arith.constant 0 : index
    %c0_4 = arith.constant 0 : index
    %2 = vector.load %arg3[%c0_2, %c0_3, %c0_4] : memref<1x1x256xi32, #tpu.memory_space<vmem>>, vector<1x1x256xi32>
    %3 = vector.shape_cast %2 : vector<1x1x256xi32> to vector<1x256xi32>
    %4 = tpu.iota {dimensions = array<i32: 0>} : vector<16x256xi32>
    %5 = vector.broadcast %3 : vector<1x256xi32> to vector<16x256xi32>
    %6 = arith.cmpi eq, %4, %5 : vector<16x256xi32>
    %7 = arith.extui %6 : vector<16x256xi1> to vector<16x256xi32>
    %8 = arith.sitofp %7 : vector<16x256xi32> to vector<16x256xf32>
    %cst = arith.constant dense<0.000000e+00> : vector<4x256xf32>
    %9 = tpu.matmul %1, %8, %cst {dimension_numbers = #tpu.dot_dimension_numbers<[1], [0], [0], [1], [0, 0, 1, 1], [], []>} : vector<4x16xf32>, vector<16x256xf32>, vector<4x256xf32> -> vector<4x256xf32>
    %c0_5 = arith.constant 0 : index
    %c0_6 = arith.constant 0 : index
    %c0_7 = arith.constant 0 : index
    %10 = vector.load %arg4[%c0_5, %c0_6, %c0_7] : memref<1x4x256xf32, #tpu.memory_space<vmem>>, vector<1x4x256xf32>
    %11 = vector.shape_cast %10 : vector<1x4x256xf32> to vector<4x256xf32>
    %12 = vector.shape_cast %9 : vector<4x256xf32> to vector<1x4x256xf32>
    tpu.vector_store %arg4[%c0_5, %c0_6, %c0_7], %12 {strides = array<i32>} : memref<1x4x256xf32, #tpu.memory_space<vmem>>, vector<1x4x256xf32>,
    return
  }
  func.func @transform_0(%arg0: i32, %arg1: i32) -> (i32, i32, i32) {
    %c0_i32 = arith.constant 0 : i32
    %c0_i32_0 = arith.constant 0 : i32
    %c0_i32_1 = arith.constant 0 : i32
    return %arg0, %c0_i32, %c0_i32_0 : i32, i32, i32
  }
  func.func @transform_1(%arg0: i32, %arg1: i32) -> (i32, i32, i32) {
    %c0_i32 = arith.constant 0 : i32
    %c0_i32_0 = arith.constant 0 : i32
    return %arg0, %c0_i32, %arg1 : i32, i32, i32
  }
  func.func @transform_2(%arg0: i32, %arg1: i32) -> (i32, i32, i32) {
    %c0_i32 = arith.constant 0 : i32
    %c0_i32_0 = arith.constant 0 : i32
    return %arg0, %c0_i32, %arg1 : i32, i32, i32
  }
}

</mosaic_0001>

<llo_original>
// kernel: tpu_custom_call.1
$region0: #{tpu_custom_call.1}
  #allocation0 [shape = 'u32[]', space=smem, size = 0x4, offset = 0x4, fixed_abs, tag = 'smem constant byte address 0x4 - core index']
  #allocation1 [shape = 'u32[144,128]{1,0:T(1,128)}', space=vmem, size = 0x12000, scoped, tag = 'internal scratch']
  %s0 = inlined_call_operand.hbm [shape: f32[2,4,16], index: 0, kind: input, shape index: {}]
  %s1 = inlined_call_operand.hbm [shape: s32[2,1,256], index: 1, kind: input, shape index: {}]
  %s2 = inlined_call_operand.hbm [shape: f32[2,4,256], index: 2, kind: output, shape index: {}]
  %s3 = sld [smem:[#allocation0]]
  $region49: #{tpu_custom_call.1} parent=0
    _
  %s5 = ssub.s32 1, %s3
  %s6 = scalar_select 0, %s5, %s3
  $region1: #{tpu_custom_call.1} parent=0
    #allocation2 [shape = 'u8[4096]{0}', space=vmem, size = 0x1000, scoped, tag = 'input window, operand 0']
    #allocation3 [shape = 's32[2]{0}', space=sflag, size = 0x8, scoped, tag = 'scoped memory for tpu_custom_call.1']
    #allocation4 [shape = 's32[2]{0}', space=sflag, size = 0x8, scoped, tag = 'scoped memory for tpu_custom_call.1']
    #allocation5 [shape = 'u8[2048]{0}', space=vmem, size = 0x800, scoped, tag = 'input window, operand 1']
    #allocation6 [shape = 's32[2]{0}', space=sflag, size = 0x8, scoped, tag = 'scoped memory for tpu_custom_call.1']
    #allocation7 [shape = 'u8[8192]{0}', space=vmem, size = 0x2000, scoped, tag = 'output window, operand 0']
    %7 = vsyncpa [#allocation3], 0
    %s8 = scalar_lea.sflag [#allocation3], 1
    %9 = vsyncpa %s8, 0
    %10 = vsyncpa [#allocation6], 0
    %s11 = scalar_lea.sflag [#allocation6], 1
    %12 = vsyncpa %s11, 0
    %13 = vsyncpa [#allocation4], 0
    %s14 = scalar_lea.sflag [#allocation4], 1
    %15 = vsyncpa %s14, 0
    loop: start=0, step=1, limit=4
    $region2: #{tpu_custom_call.1} parent=1 // loop_pre_header
      _
    $region3: #{tpu_custom_call.1} parent=1 // loop_header
      %s17 = sphi 0, %s21
      %p18 = scmp.ge.s32.totalorder %s17, 4
      %s24 = sphi 0, %s36
      %s25 = sphi 0, %s32
      %s26 = sphi 0, %s24
      %s27 = sphi 0, %s25
      %s28 = sphi 0, %s26
      %s29 = sphi 0, %s27
      %s39 = sphi 0, %s41
      %s42 = sphi 0, %s39
      %s43 = sphi 0, %s42
      %s59 = sphi 0, %s43
      %s67 = sphi 0, %s69
      %s70 = sphi 0, %s67
      %s71 = sphi 0, %s70
      %s87 = sphi 0, %s71
      %s95 = sphi 0, %s97
      %s98 = sphi 0, %s95
      %s99 = sphi 0, %s98
      %s115 = sphi 0, %s99
    $region4: #{tpu_custom_call.1} parent=1 // loop_header_branch
      %20 = sbr.rel (%p18) target = $region8
    $region5: #{tpu_custom_call.1} parent=1 // loop_body
      %s22 = ssub.s32 %s17, 1
      %s23 = ssub.s32 %s17, 2
      %s30 = sadd.s32 1, %s25
      %p31 = scmp.ge.s32.totalorder %s30, 1
      %s32 = scalar_select %p31, 0, %s30
      %s33 = sadd.s32 1, %s24
      %s34 = scalar_select %p31, %s33, %s24
      %p35 = scmp.ge.s32.totalorder %s34, 2
      %s36 = scalar_select %p35, 0, %s34
      %s37 = ssub.s32 %s24, %s36
      %p38 = scmp.eq.s32.totalorder %s37, 0
      %s40 = sadd.s32 %s39, 1
      %s41 = scalar_select %p38, %s39, %s40
      %p44 = pneg %p38
      %p45 = scmp.eq.s32.totalorder %s17, 1
      %p46 = por %p44, %p45
      %p47 = scmp.ne.s32.totalorder %s39, %s42
      %p48 = scmp.eq.s32.totalorder %s17, 0
      %p49 = por %p47, %p48
      %p50 = scmp.ne.s32.totalorder %s39, %s42
      %p51 = scmp.eq.s32.totalorder %s22, 1
      %p52 = por %p50, %p51
      %p53 = scmp.ne.s32.totalorder %s42, %s43
      %p54 = scmp.eq.s32.totalorder %s22, 0
      %p55 = por %p53, %p54
      %p56 = scmp.ne.s32.totalorder %s42, %s43
      %p57 = scmp.eq.s32.totalorder %s23, 1
      %p58 = por %p56, %p57
      %p60 = scmp.ne.s32.totalorder %s43, %s59
      %p61 = scmp.eq.s32.totalorder %s23, 0
      %p62 = por %p60, %p61
      %s63 = ssub.s32 %s24, %s36
      %s64 = ssub.s32 %s25, %s32
      %s65 = sor.u32 %s63, %s64
      %p66 = scmp.eq.s32.totalorder %s65, 0
      %s68 = sadd.s32 %s67, 1
      %s69 = scalar_select %p66, %s67, %s68
      %p72 = pneg %p66
      %p73 = scmp.eq.s32.totalorder %s17, 1
      %p74 = por %p72, %p73
      %p75 = scmp.ne.s32.totalorder %s67, %s70
      %p76 = scmp.eq.s32.totalorder %s17, 0
      %p77 = por %p75, %p76
      %p78 = scmp.ne.s32.totalorder %s67, %s70
      %p79 = scmp.eq.s32.totalorder %s22, 1
      %p80 = por %p78, %p79
      %p81 = scmp.ne.s32.totalorder %s70, %s71
      %p82 = scmp.eq.s32.totalorder %s22, 0
      %p83 = por %p81, %p82
      %p84 = scmp.ne.s32.totalorder %s70, %s71
      %p85 = scmp.eq.s32.totalorder %s23, 1
      %p86 = por %p84, %p85
      %p88 = scmp.ne.s32.totalorder %s71, %s87
      %p89 = scmp.eq.s32.totalorder %s23, 0
      %p90 = por %p88, %p89
      %s91 = ssub.s32 %s24, %s36
      %s92 = ssub.s32 %s25, %s32
      %s93 = sor.u32 %s91, %s92
      %p94 = scmp.eq.s32.totalorder %s93, 0
      %s96 = sadd.s32 %s95, 1
      %s97 = scalar_select %p94, %s95, %s96
      %p100 = pneg %p94
      %p101 = scmp.eq.s32.totalorder %s17, 1
      %p102 = por %p100, %p101
      %p103 = scmp.ne.s32.totalorder %s95, %s98
      %p104 = scmp.eq.s32.totalorder %s17, 0
      %p105 = por %p103, %p104
      %p106 = scmp.ne.s32.totalorder %s95, %s98
      %p107 = scmp.eq.s32.totalorder %s22, 1
      %p108 = por %p106, %p107
      %p109 = scmp.ne.s32.totalorder %s98, %s99
      %p110 = scmp.eq.s32.totalorder %s22, 0
      %p111 = por %p109, %p110
      %p112 = scmp.ne.s32.totalorder %s98, %s99
      %p113 = scmp.eq.s32.totalorder %s23, 1
      %p114 = por %p112, %p113
      %p116 = scmp.ne.s32.totalorder %s99, %s115
      %p117 = scmp.eq.s32.totalorder %s23, 0
      %p118 = por %p116, %p117
      %p119 = scmp.le.s32.totalorder 1, %s17
      %p120 = scmp.lt.s32.totalorder %s17, 3
      %p121 = pnand %p119, %p120
      %p122 = pneg %p121
      // Predicated region
      $region9: #{tpu_custom_call.1} parent=5 // pred_check
        _
      $region10: #{tpu_custom_call.1} parent=5 // pred_check_branch
        %124 = sbr.rel (%p121) target = $region12
      $region11: #{tpu_custom_call.1} parent=5 // pred_region
        %s125 = ssub.s32 %s17, 1
      $region12: #{tpu_custom_call.1} parent=5 // pred_fallthru
        _
      %p126 = scmp.lt.s32.totalorder %s17, 2
      // Predicated region
      $region13: #{tpu_custom_call.1} parent=5 // pred_check
        %p127 = pneg %p126
      $region14: #{tpu_custom_call.1} parent=5 // pred_check_branch
        %129 = sbr.rel (%p127) target = $region16
      $region15: #{tpu_custom_call.1} parent=5 // pred_region
        // Predicated region
        $region17: #{tpu_custom_call.1} parent=15 // pred_check
          %p130 = pneg %p49
        $region18: #{tpu_custom_call.1} parent=15 // pred_check_branch
          %132 = sbr.rel (%p130) target = $region20
        $region19: #{tpu_custom_call.1} parent=15 // pred_region
          %s133 = sand.u32 %s39, 1
          %s134 = scalar_lea.sflag [#allocation3], %s133
          %s135 = sand.u32 %s39, 1
          %s136 = smul.addr %s135, 4
          %s137 = scalar_lea.vmem [#allocation2], %s136
          %s139 = ssub.s32 64, 64
          %140 = vsyncadd %s134, %s139
          %s141 = smul.addr %s24, 64
          %s142 = scalar_lea.hbm %s0, %s141
          %s144 = sshll.u32 %s137, 4
          %s145 = int_to_ptr.vmem [resolvable:$true] %s144
          %147 = dma.hbm_to_vmem [thread:$0]  %s142, 64, %s145, %s134
        $region20: #{tpu_custom_call.1} parent=15 // pred_fallthru
          _
        // Predicated region
        $region21: #{tpu_custom_call.1} parent=15 // pred_check
          %p148 = pneg %p77
        $region22: #{tpu_custom_call.1} parent=15 // pred_check_branch
          %150 = sbr.rel (%p148) target = $region24
        $region23: #{tpu_custom_call.1} parent=15 // pred_region
          %s151 = sand.u32 %s67, 1
          %s152 = scalar_lea.sflag [#allocation6], %s151
          %s153 = sand.u32 %s67, 1
          %s154 = smul.addr %s153, 2
          %s155 = scalar_lea.vmem [#allocation5], %s154
          %s156 = smul.u32 2, %s25
          %s158 = ssub.s32 32, 32
          %159 = vsyncadd %s152, %s158
          %s160 = smul.addr %s24, 2
          %s161 = sadd.s32 %s156, %s160
          %s162 = smul.addr %s161, 16
          %s163 = scalar_lea.hbm %s1, %s162
          %s165 = sshll.u32 %s155, 4
          %s166 = int_to_ptr.vmem [resolvable:$true] %s165
          %168 = dma.hbm_to_vmem [thread:$0]  %s163, 32, %s166, %s152
        $region24: #{tpu_custom_call.1} parent=15 // pred_fallthru
          _
      $region16: #{tpu_custom_call.1} parent=5 // pred_fallthru
        _
      %p169 = scmp.le.s32.totalorder 1, %s17
      %p170 = scmp.lt.s32.totalorder %s17, 3
      %p171 = pnand %p169, %p170
      %p172 = pneg %p171
      // Predicated region
      $region25: #{tpu_custom_call.1} parent=5 // pred_check
        _
      $region26: #{tpu_custom_call.1} parent=5 // pred_check_branch
        %174 = sbr.rel (%p171) target = $region28
      $region27: #{tpu_custom_call.1} parent=5 // pred_region
        %s175 = ssub.s32 %s17, 1
        %s176 = sand.u32 %s42, 1
        %s177 = scalar_lea.sflag [#allocation3], %s176
        %s178 = sand.u32 %s42, 1
        %s179 = smul.addr %s178, 4
        %s180 = scalar_lea.vmem [#allocation2], %s179
        // Predicated region
        $region29: #{tpu_custom_call.1} parent=27 // pred_check
          %p181 = pneg %p55
        $region30: #{tpu_custom_call.1} parent=27 // pred_check_branch
          %183 = sbr.rel (%p181) target = $region32
        $region31: #{tpu_custom_call.1} parent=27 // pred_region
          %184 = dma.done %s177, 64
        $region32: #{tpu_custom_call.1} parent=27 // pred_fallthru
          _
        %s185 = sand.u32 %s70, 1
        %s186 = scalar_lea.sflag [#allocation6], %s185
        %s187 = sand.u32 %s70, 1
        %s188 = smul.addr %s187, 2
        %s189 = scalar_lea.vmem [#allocation5], %s188
        // Predicated region
        $region33: #{tpu_custom_call.1} parent=27 // pred_check
          %p190 = pneg %p83
        $region34: #{tpu_custom_call.1} parent=27 // pred_check_branch
          %192 = sbr.rel (%p190) target = $region36
        $region35: #{tpu_custom_call.1} parent=27 // pred_region
          %193 = dma.done %s186, 32
        $region36: #{tpu_custom_call.1} parent=27 // pred_fallthru
          _
        %s194 = sand.u32 %s42, 1
        %s195 = scalar_lea.sflag [#allocation3], %s194
        %s196 = sand.u32 %s42, 1
        %s197 = smul.addr %s196, 4
        %s198 = scalar_lea.vmem [#allocation2], %s197
        %p199 = pneg %p55
        %p200 = pneg %p52
        %s201 = sand.u32 %s70, 1
        %s202 = scalar_lea.sflag [#allocation6], %s201
        %s203 = sand.u32 %s70, 1
        %s204 = smul.addr %s203, 2
        %s205 = scalar_lea.vmem [#allocation5], %s204
        %p206 = pneg %p83
        %p207 = pneg %p80
        %p208 = pneg %p111
        %p209 = pneg %p108
        %s210 = sand.u32 %s98, 1
        %s211 = scalar_lea.sflag [#allocation4], %s210
        %s212 = sand.u32 %s98, 1
        %s213 = smul.addr %s212, 8
        %s214 = scalar_lea.vmem [#allocation7], %s213
        %s215 = smul.u32 2, %s27
        %s216 = smul.u32 2, %s27
        %v217 = vld [vmem:[%s180] sm:$0xf]
        %v218 = vld [vmem:[%s189] sm:$0x3]
        %v219 = vlaneseq
        %v220 = vshrl.u32 %v219, 7
        %v221 = vadd.s32 %v220, 8
        %v222 = vlaneseq
        %v223 = vshrl.u32 %v222, 7
        %v224 = vsub.s32 0, %v223
        %v225 = vrot.slane %v218, %v224
        %v226 = vlaneseq
        %v227 = vshrl.u32 %v226, 7
        %v228 = vsub.s32 1, %v227
        %v229 = vrot.slane %v218, %v228
        %vm230 = vcmp.eq.s32.totalorder %v220, %v225
        %vm231 = vcmp.eq.s32.totalorder %v220, %v229
        %vm232 = vcmp.eq.s32.totalorder %v221, %v225
        %vm233 = vcmp.eq.s32.totalorder %v221, %v229
        %v234 = vsel %vm230, 1, 0
        %v235 = vsel %vm231, 1, 0
        %v236 = vsel %vm232, 1, 0
        %v237 = vsel %vm233, 1, 0
        %v238 = vcvt.s32.f32 %v234
        %v239 = vcvt.s32.f32 %v235
        %v240 = vcvt.s32.f32 %v236
        %v241 = vcvt.s32.f32 %v237
        %vm242 = vcmask 130048
        %v244 = vsel %vm242, %v217, 0
        %246 = vmatprep.subr.mxu0 0.0
        %247 = vmatpush1.msra.mxu0 0.0
        %248 = vmatprep.subr.mxu0 0.0
        %249 = vmatpush1.msra.mxu0 0.0
        %250 = vmatprep.subr.mxu0 0.0
        %251 = vmatpush1.msra.mxu0 0.0
        %252 = vmatprep.subr.mxu0 0.0
        %253 = vmatpush1.msra.mxu0 0.0
        %254 = vmatprep.subr.mxu0 0.0
        %255 = vmatpush1.msra.mxu0 0.0
        %256 = vmatprep.subr.mxu0 0.0
        %257 = vmatpush1.msra.mxu0 0.0
        %258 = vmatprep.subr.mxu0 0.0
        %259 = vmatpush1.msra.mxu0 0.0
        %260 = vmatprep.subr.mxu0 0.0
        %261 = vmatpush1.msra.mxu0 0.0
        %262 = vmatprep.subr.mxu0 0.0
        %263 = vmatpush1.msra.mxu0 0.0
        %264 = vmatprep.subr.mxu0 0.0
        %265 = vmatpush1.msra.mxu0 0.0
        %266 = vmatprep.subr.mxu0 0.0
        %267 = vmatpush1.msra.mxu0 0.0
        %268 = vmatprep.subr.mxu0 0.0
        %269 = vmatpush1.msra.mxu0 0.0
        %270 = vmatprep.subr.mxu0 0.0
        %271 = vmatpush1.msra.mxu0 0.0
        %272 = vmatprep.subr.mxu0 0.0
        %273 = vmatpush1.msra.mxu0 0.0
        %274 = vmatprep.subr.mxu0 %v241
        %275 = vmatpush1.msra.mxu0 %v240
        %276 = vmatprep.subr.mxu0 %v239
        %277 = vmatpush1.msra.mxu0 %v238
        %278 = vmatprep.subr.mxu0 0.0
        %279 = vmatpush2.msra.mxu0 0.0
        %280 = vmatprep.subr.mxu0 0.0
        %281 = vmatpush2.msra.mxu0 0.0
        %282 = vmatprep.subr.mxu0 0.0
        %283 = vmatpush2.msra.mxu0 0.0
        %284 = vmatprep.subr.mxu0 0.0
        %285 = vmatpush2.msra.mxu0 0.0
        %286 = vmatprep.subr.mxu0 0.0
        %287 = vmatpush2.msra.mxu0 0.0
        %288 = vmatprep.subr.mxu0 0.0
        %289 = vmatpush2.msra.mxu0 0.0
        %290 = vmatprep.subr.mxu0 0.0
        %291 = vmatpush2.msra.mxu0 0.0
        %292 = vmatprep.subr.mxu0 0.0
        %293 = vmatpush2.msra.mxu0 0.0
        %294 = vmatprep.subr.mxu0 0.0
        %295 = vmatpush2.msra.mxu0 0.0
        %296 = vmatprep.subr.mxu0 0.0
        %297 = vmatpush2.msra.mxu0 0.0
        %298 = vmatprep.subr.mxu0 0.0
        %299 = vmatpush2.msra.mxu0 0.0
        %300 = vmatprep.subr.mxu0 0.0
        %301 = vmatpush2.msra.mxu0 0.0
        %302 = vmatprep.subr.mxu0 0.0
        %303 = vmatpush2.msra.mxu0 0.0
        %304 = vmatprep.subr.mxu0 0.0
        %305 = vmatpush2.msra.mxu0 0.0
        %306 = vmatprep.subr.mxu0 0.0
        %307 = vmatpush2.msra.mxu0 0.0
        %308 = vmatprep.subr.mxu0 0.0
        %309 = vmatpush2.msra.mxu0 0.0
        %310 = vmatprep.mubr.f32.mxu0 0.0
        %311 = vmatmul.mubr.f32.gmra.mxu0 %v244
        %v312 = vpop.f32.mrf.mxu0
        %v313 = vadd.f32 0.0, %v312
        %v314 = vpop.f32.mrf.mxu0
        %v315 = vadd.f32 0.0, %v314
        %316 = vdwg.mxu0
        %v319 = vcombine.low %v313, %v315
        %321 = vst [vmem:[%s214] sm:$0xff] %v319
        %s322 = sand.u32 %s98, 1
        %s323 = scalar_lea.sflag [#allocation4], %s322
        %s324 = sand.u32 %s98, 1
        %s325 = smul.addr %s324, 8
        %s326 = scalar_lea.vmem [#allocation7], %s325
        // Predicated region
        $region37: #{tpu_custom_call.1} parent=27 // pred_check
          %p327 = pneg %p108
        $region38: #{tpu_custom_call.1} parent=27 // pred_check_branch
          %329 = sbr.rel (%p327) target = $region40
        $region39: #{tpu_custom_call.1} parent=27 // pred_region
          %s330 = smul.u32 2, %s27
          %s332 = ssub.s32 128, 128
          %333 = vsyncadd %s323, %s332
          %s334 = smul.addr %s26, 2
          %s335 = sadd.s32 %s330, %s334
          %s336 = smul.addr %s335, 64
          %s337 = scalar_lea.hbm %s2, %s336
          %s339 = sshll.u32 %s326, 4
          %s340 = int_to_ptr.vmem [resolvable:$true] %s339
          %342 = dma.vmem_to_hbm [thread:$0]  %s340, 128, %s337, %s323
        $region40: #{tpu_custom_call.1} parent=27 // pred_fallthru
          _
      $region28: #{tpu_custom_call.1} parent=5 // pred_fallthru
        _
      %p343 = scmp.le.s32.totalorder 2, %s17
      // Predicated region
      $region41: #{tpu_custom_call.1} parent=5 // pred_check
        %p344 = pneg %p343
      $region42: #{tpu_custom_call.1} parent=5 // pred_check_branch
        %346 = sbr.rel (%p344) target = $region44
      $region43: #{tpu_custom_call.1} parent=5 // pred_region
        %s347 = ssub.s32 %s17, 2
        // Predicated region
        $region45: #{tpu_custom_call.1} parent=43 // pred_check
          %p348 = pneg %p114
        $region46: #{tpu_custom_call.1} parent=43 // pred_check_branch
          %350 = sbr.rel (%p348) target = $region48
        $region47: #{tpu_custom_call.1} parent=43 // pred_region
          %s351 = sand.u32 %s99, 1
          %s352 = scalar_lea.sflag [#allocation4], %s351
          %s353 = sand.u32 %s99, 1
          %s354 = smul.addr %s353, 8
          %s355 = scalar_lea.vmem [#allocation7], %s354
          %356 = dma.done %s352, 128
        $region48: #{tpu_custom_call.1} parent=43 // pred_fallthru
          _
      $region44: #{tpu_custom_call.1} parent=5 // pred_fallthru
        _
    $region6: #{tpu_custom_call.1} parent=1 // loop_footer
      %s21 = sadd.s32 1, %s17
    $region7: #{tpu_custom_call.1} parent=1 // loop_footer_branch
      %16 = sbr.rel target = $region3
    $region8: #{tpu_custom_call.1} parent=1 // loop_exit
      _
    %357 = vsyncpa [#allocation3], 1
    %s358 = scalar_lea.sflag [#allocation3], 1
    %359 = vsyncpa %s358, 1
    %360 = vsyncpa [#allocation6], 1
    %s361 = scalar_lea.sflag [#allocation6], 1
    %362 = vsyncpa %s361, 1
    %363 = vsyncpa [#allocation4], 1
    %s364 = scalar_lea.sflag [#allocation4], 1
    %365 = vsyncpa %s364, 1

</llo_original>
